<compile_context>
chip_gen: v7x
topology: tpu7x:2x2x1
jax: 0.10.0
libtpu: 0.0.40
codegen_flags: <defaults>
</compile_context>

<pallas_src>
import functools

import jax
import jax.numpy as jnp
from jax.experimental import pallas as pl
from jax.experimental.pallas import tpu as pltpu


def _cdiv(a, b):
    return -(-a // b)


def _round_up(x, m):
    return (x + m - 1) // m * m


def _luong_kernel(enc_ref, dec_ref, ctx_ref, attn_ref,
                  s_scr, m_scr, l_scr, acc_scr,
                  *, seq_len, block_l, num_l_blocks, needs_l_mask):
    # enc_ref : (Bt, Lt, H)   L-tile of encoder outputs (native dtype)
    # dec_ref : (Bt, H)       decoder hidden states
    # ctx_ref : (Bt, H)       context output      (written on last L step)
    # attn_ref: (Bt, L)       attention weights   (written on last L step)
    # s_scr   : (nL, Bt, Lt)  raw-score stash for the final weight pass
    # m_scr   : (Bt, 1, 1)    running max   (online softmax)
    # l_scr   : (Bt, 1, 1)    running sum   (online softmax)
    # acc_scr : (Bt, H)       running (unnormalized) context accumulator
    l_blk = pl.program_id(1)

    @pl.when(l_blk == 0)
    def _init():
        m_scr[...] = jnp.full(m_scr.shape, -jnp.inf, jnp.float32)
        l_scr[...] = jnp.zeros(l_scr.shape, jnp.float32)
        acc_scr[...] = jnp.zeros(acc_scr.shape, jnp.float32)

    enc = enc_ref[...]                                  # native dtype; no persistent f32 copy
    dec = dec_ref[...].astype(jnp.float32)              # (Bt, H), tiny

    # scores[b, l] = <enc[b, l, :], dec[b, :]>, kept with L on the SUBLANE axis.
    # Lane-axis reduce over H with keepdims -> (Bt, Lt, 1); everything that
    # follows (max / exp / sum / weights*enc) stays in this layout, so no
    # lane<->sublane relayout round-trip on the big tile.
    s = jnp.sum(enc.astype(jnp.float32) * dec[:, None, :],
                axis=-1, keepdims=True)                 # (Bt, Lt, 1) f32

    if needs_l_mask:
        # Ragged last L tile: positions >= seq_len hold garbage -> mask them.
        pos = l_blk * block_l + jax.lax.broadcasted_iota(jnp.int32, s.shape, 1)
        valid = pos < seq_len
        s = jnp.where(valid, s, -jnp.inf)

    # --- online (flash-style) softmax update over the L-tile grid axis -----
    m_prev = m_scr[...]                                            # (Bt, 1, 1)
    m_new = jnp.maximum(m_prev, jnp.max(s, axis=1, keepdims=True))  # sublane reduce
    alpha = jnp.exp(m_prev - m_new)                                # (Bt, 1, 1)
    p = jnp.exp(s - m_new)                                         # (Bt, Lt, 1)

    l_scr[...] = alpha * l_scr[...] + jnp.sum(p, axis=1, keepdims=True)
    m_scr[...] = m_new

    # context contribution: sum_l p[b,l] * enc[b,l,:]  (sublane reduce)
    contrib = p * enc.astype(jnp.float32)                          # transient f32 temp
    if needs_l_mask:
        contrib = jnp.where(valid, contrib, 0.0)   # kill any 0 * garbage(NaN/Inf)
    acc_scr[...] = alpha[:, :, 0] * acc_scr[...] + jnp.sum(contrib, axis=1)

    # Stash raw scores for the final normalized-weights pass.  This is the one
    # small relayout ((Bt, Lt, 1) -> (Bt, Lt)) per tile.
    s_scr[l_blk] = s[:, :, 0]

    @pl.when(l_blk == num_l_blocks - 1)
    def _finalize():
        m_fin = m_scr[...][:, :, 0]                    # (Bt, 1)
        l_fin = l_scr[...][:, :, 0]                    # (Bt, 1)
        inv = pl.reciprocal(l_fin, approx=True)        # EUP slot
        inv = inv * (2.0 - l_fin * inv)                # one Newton step -> ~f32 accuracy

        ctx_ref[...] = (acc_scr[...] * inv).astype(ctx_ref.dtype)

        # Normalized attention weights, chunk by chunk with static slices
        # (attn output block is resident across the L axis).
        for j in range(num_l_blocks):
            start = j * block_l
            width = min(block_l, seq_len - start)
            w = jnp.exp(s_scr[j] - m_fin) * inv        # (Bt, block_l)
            attn_ref[:, start:start + width] = w[:, :width].astype(attn_ref.dtype)


def luong_dot_attention(encoder_outputs, decoder_hidden, *, block_b=None, block_l=None):
    """encoder_outputs: (B, L, H); decoder_hidden: (B, H)
    returns (context_vector (B, H), attention_weights (B, L))"""
    B, L, H = encoder_outputs.shape
    assert decoder_hidden.shape == (B, H)
    dtype = encoder_outputs.dtype
    itemsize = jnp.dtype(dtype).itemsize

    # ---- generation-aware VMEM limit (v5e/v6e: 128 MiB, v7x: 64 MiB) ------
    try:
        info = pltpu.get_tpu_info()
        vmem_cap = int(getattr(info, "vmem_capacity_bytes", 64 * 1024 * 1024))
    except Exception:  # pragma: no cover - conservative fallback
        vmem_cap = 64 * 1024 * 1024
    vmem_limit = max(32 * 1024 * 1024, vmem_cap - 16 * 1024 * 1024)

    # Per-buffer enc tile budget.  Live VMEM ~= 2x native tile (double buffer)
    # + 1-2x f32 product temporaries, so keep the raw tile <= ~1/5 of the
    # limit (and never above 16 MiB; mem-bound returns flatten out there).
    tile_budget = min(16 * 1024 * 1024, vmem_limit // 5)

    row_bytes = L * H * itemsize  # one batch row of enc

    # ---- batch tile ---------------------------------------------------------
    if block_b is None:
        if B <= 8:
            block_b = B                       # full batch dim -> (8,128)-rule exempt
        else:
            fit = max(8, (tile_budget // max(row_bytes, 1)) // 8 * 8)
            # Keep >=4 batch grid steps for pipelining (and v7x core sharding)
            # whenever the batch allows; NO halving "for a 2nd core" on v5e/v6e.
            target = max(8, _round_up(_cdiv(B, 4), 8))
            block_b = int(min(fit, target, _round_up(B, 8)))
    nb = _cdiv(B, block_b)

    # ---- L tile (flash-style online softmax over the L grid axis) ----------
    if block_l is None:
        if block_b * row_bytes <= tile_budget:
            block_l = L                       # whole sequence fits one tile
        else:
            block_l = max(8, (tile_budget // max(block_b * H * itemsize, 1)) // 8 * 8)
            block_l = min(block_l, _round_up(L, 8))
    nl = _cdiv(L, block_l)

    # Never leave a single-step grid on meaningfully sized problems: with one
    # step there is no software pipelining and the full HBM latency is exposed.
    if nb * nl == 1 and L > 8 and B * row_bytes > (1 << 20):
        block_l = max(8, _round_up(_cdiv(L, 4), 8))
        nl = _cdiv(L, block_l)

    needs_l_mask = (nl * block_l != L)

    kernel = functools.partial(
        _luong_kernel,
        seq_len=L, block_l=block_l, num_l_blocks=nl, needs_l_mask=needs_l_mask)

    ctx, attn = pl.pallas_call(
        kernel,
        out_shape=(
            jax.ShapeDtypeStruct((B, H), dtype),   # context
            jax.ShapeDtypeStruct((B, L), dtype),   # attention weights
        ),
        grid_spec=pltpu.PrefetchScalarGridSpec(
            num_scalar_prefetch=0,
            grid=(nb, nl),
            in_specs=[
                # Full-extent L/H tiles => no wrapper-side jnp.pad of enc.
                pl.BlockSpec((block_b, block_l, H), lambda b, l: (b, l, 0)),
                pl.BlockSpec((block_b, H), lambda b, l: (b, 0)),
            ],
            out_specs=[
                pl.BlockSpec((block_b, H), lambda b, l: (b, 0)),
                pl.BlockSpec((block_b, L), lambda b, l: (b, 0)),
            ],
            scratch_shapes=[
                pltpu.VMEM((nl, block_b, block_l), jnp.float32),  # raw-score stash
                pltpu.VMEM((block_b, 1, 1), jnp.float32),         # running max
                pltpu.VMEM((block_b, 1, 1), jnp.float32),         # running sum
                pltpu.VMEM((block_b, H), jnp.float32),            # context accumulator
            ],
        ),
        compiler_params=pltpu.CompilerParams(
            dimension_semantics=("parallel", "arbitrary"),
            vmem_limit_bytes=int(vmem_limit),
        ),
    )(encoder_outputs, decoder_hidden)

    return ctx, attn


def _reference(encoder_outputs, decoder_hidden):
    # Pure-JAX reference mirroring the PyTorch forward.
    dec = decoder_hidden[:, None, :]                                   # (B,1,H)
    scores = jnp.einsum("bqh,blh->bql", dec, encoder_outputs)          # (B,1,L)
    w = jax.nn.softmax(scores, axis=-1)
    ctx = jnp.einsum("bql,blh->bqh", w, encoder_outputs)               # (B,1,H)
    return ctx[:, 0, :], w[:, 0, :]


if __name__ == "__main__":
    key = jax.random.PRNGKey(0)
    k1, k2 = jax.random.split(key)
    B, L, H = 2, 8, 32
    encoder_outputs = jax.random.normal(k1, (B, L, H), dtype=jnp.float32)
    decoder_hidden = jax.random.normal(k2, (B, H), dtype=jnp.float32)

    ctx, attn = luong_dot_attention(encoder_outputs, decoder_hidden)
    jax.block_until_ready((ctx, attn))

    ref_ctx, ref_attn = _reference(encoder_outputs, decoder_hidden)
    assert ctx.shape == (B, H) and attn.shape == (B, L)
    assert jnp.allclose(ctx, ref_ctx, atol=1e-4, rtol=1e-4), "context mismatch"
    assert jnp.allclose(attn, ref_attn, atol=1e-4, rtol=1e-4), "attn mismatch"
    assert jnp.allclose(jnp.sum(attn, axis=-1), 1.0, atol=1e-4), "weights not normalized"

    print("KERNEL_OK")
</pallas_src>

<mosaic_0001>
module attributes {stable_mosaic.version = 11 : i64} {
  func.func @_luong_kernel(%arg0: i32, %arg1: i32, %arg2: memref<2x8x32xf32, #tpu.memory_space<vmem>>, %arg3: memref<2x32xf32, #tpu.memory_space<vmem>>, %arg4: memref<2x32xf32, #tpu.memory_space<vmem>>, %arg5: memref<2x8xf32, #tpu.memory_space<vmem>>, %arg6: memref<1x2x8xf32, #tpu.memory_space<vmem>>, %arg7: memref<2x1x1xf32, #tpu.memory_space<vmem>>, %arg8: memref<2x1x1xf32, #tpu.memory_space<vmem>>, %arg9: memref<2x32xf32, #tpu.memory_space<vmem>>) attributes {dimension_semantics = [#tpu.dimension_semantics<parallel>, #tpu.dimension_semantics<arbitrary>], iteration_bounds = array<i64: 1, 1>, scalar_prefetch = 0 : i64, scratch_operands = 4 : i64, tpu.core_type = #tpu.core_type<tc>, window_params = [{transform_indices = @transform_0, window_bounds = array<i64: 2, 8, 32>}, {transform_indices = @transform_1, window_bounds = array<i64: 2, 32>}, {transform_indices = @transform_2, window_bounds = array<i64: 2, 32>}, {transform_indices = @transform_3, window_bounds = array<i64: 2, 8>}]} {
    %c0_i32 = arith.constant 0 : i32
    %0 = arith.cmpi eq, %arg1, %c0_i32 : i32
    %1 = arith.extui %0 : i1 to i32
    %c0_i32_0 = arith.constant 0 : i32
    %2 = arith.cmpi ne, %1, %c0_i32_0 : i32
    scf.if %2 {
      %cst_28 = arith.constant 0xFF800000 : f32
      %43 = vector.broadcast %cst_28 : f32 to vector<2x1x1xf32>
      %c0_29 = arith.constant 0 : index
      %c0_30 = arith.constant 0 : index
      %c0_31 = arith.constant 0 : index
      %44 = vector.load %arg7[%c0_29, %c0_30, %c0_31] : memref<2x1x1xf32, #tpu.memory_space<vmem>>, vector<2x1x1xf32>
      tpu.vector_store %arg7[%c0_29, %c0_30, %c0_31], %43 {strides = array<i32>} : memref<2x1x1xf32, #tpu.memory_space<vmem>>, vector<2x1x1xf32>,
      %cst_32 = arith.constant 0.000000e+00 : f32
      %45 = vector.broadcast %cst_32 : f32 to vector<2x1x1xf32>
      %c0_33 = arith.constant 0 : index
      %c0_34 = arith.constant 0 : index
      %c0_35 = arith.constant 0 : index
      %46 = vector.load %arg8[%c0_33, %c0_34, %c0_35] : memref<2x1x1xf32, #tpu.memory_space<vmem>>, vector<2x1x1xf32>
      tpu.vector_store %arg8[%c0_33, %c0_34, %c0_35], %45 {strides = array<i32>} : memref<2x1x1xf32, #tpu.memory_space<vmem>>, vector<2x1x1xf32>,
      %cst_36 = arith.constant 0.000000e+00 : f32
      %47 = vector.broadcast %cst_36 : f32 to vector<2x32xf32>
      %c0_37 = arith.constant 0 : index
      %c0_38 = arith.constant 0 : index
      %48 = vector.load %arg9[%c0_37, %c0_38] : memref<2x32xf32, #tpu.memory_space<vmem>>, vector<2x32xf32>
      tpu.vector_store %arg9[%c0_37, %c0_38], %47 {strides = array<i32>} : memref<2x32xf32, #tpu.memory_space<vmem>>, vector<2x32xf32>,
    } else {
    }
    %c0 = arith.constant 0 : index
    %c0_1 = arith.constant 0 : index
    %c0_2 = arith.constant 0 : index
    %3 = vector.load %arg2[%c0, %c0_1, %c0_2] : memref<2x8x32xf32, #tpu.memory_space<vmem>>, vector<2x8x32xf32>
    %c0_3 = arith.constant 0 : index
    %c0_4 = arith.constant 0 : index
    %4 = vector.load %arg3[%c0_3, %c0_4] : memref<2x32xf32, #tpu.memory_space<vmem>>, vector<2x32xf32>
    %5 = vector.shape_cast %4 : vector<2x32xf32> to vector<2x1x32xf32>
    %6 = vector.broadcast %5 : vector<2x1x32xf32> to vector<2x8x32xf32>
    %7 = arith.mulf %3, %6 : vector<2x8x32xf32>
    %cst = arith.constant dense<0.000000e+00> : vector<2x8xf32>
    %8 = vector.multi_reduction <add>, %7, %cst [2] : vector<2x8x32xf32> to vector<2x8xf32>
    %9 = vector.shape_cast %8 : vector<2x8xf32> to vector<2x8x1xf32>
    %c0_5 = arith.constant 0 : index
    %c0_6 = arith.constant 0 : index
    %c0_7 = arith.constant 0 : index
    %10 = vector.load %arg7[%c0_5, %c0_6, %c0_7] : memref<2x1x1xf32, #tpu.memory_space<vmem>>, vector<2x1x1xf32>
    %cst_8 = arith.constant dense<0xFF800000> : vector<2x1xf32>
    %11 = vector.multi_reduction <maximumf>, %9, %cst_8 [1] : vector<2x8x1xf32> to vector<2x1xf32>
    %12 = vector.shape_cast %11 : vector<2x1xf32> to vector<2x1x1xf32>
    %13 = arith.maximumf %10, %12 : vector<2x1x1xf32>
    %14 = arith.subf %10, %13 : vector<2x1x1xf32>
    %15 = math.exp %14 : vector<2x1x1xf32>
    %16 = vector.broadcast %13 : vector<2x1x1xf32> to vector<2x8x1xf32>
    %17 = arith.subf %9, %16 : vector<2x8x1xf32>
    %18 = math.exp %17 : vector<2x8x1xf32>
    %c0_9 = arith.constant 0 : index
    %c0_10 = arith.constant 0 : index
    %c0_11 = arith.constant 0 : index
    %19 = vector.load %arg8[%c0_9, %c0_10, %c0_11] : memref<2x1x1xf32, #tpu.memory_space<vmem>>, vector<2x1x1xf32>
    %20 = arith.mulf %15, %19 : vector<2x1x1xf32>
    %cst_12 = arith.constant dense<0.000000e+00> : vector<2x1xf32>
    %21 = vector.multi_reduction <add>, %18, %cst_12 [1] : vector<2x8x1xf32> to vector<2x1xf32>
    %22 = vector.shape_cast %21 : vector<2x1xf32> to vector<2x1x1xf32>
    %23 = arith.addf %20, %22 : vector<2x1x1xf32>
    %c0_13 = arith.constant 0 : index
    %c0_14 = arith.constant 0 : index
    %c0_15 = arith.constant 0 : index
    %24 = vector.load %arg8[%c0_13, %c0_14, %c0_15] : memref<2x1x1xf32, #tpu.memory_space<vmem>>, vector<2x1x1xf32>
    tpu.vector_store %arg8[%c0_13, %c0_14, %c0_15], %23 {strides = array<i32>} : memref<2x1x1xf32, #tpu.memory_space<vmem>>, vector<2x1x1xf32>,
    %c0_16 = arith.constant 0 : index
    %c0_17 = arith.constant 0 : index
    %c0_18 = arith.constant 0 : index
    %25 = vector.load %arg7[%c0_16, %c0_17, %c0_18] : memref<2x1x1xf32, #tpu.memory_space<vmem>>, vector<2x1x1xf32>
    tpu.vector_store %arg7[%c0_16, %c0_17, %c0_18], %13 {strides = array<i32>} : memref<2x1x1xf32, #tpu.memory_space<vmem>>, vector<2x1x1xf32>,
    %26 = vector.broadcast %18 : vector<2x8x1xf32> to vector<2x8x32xf32>
    %27 = arith.mulf %26, %3 : vector<2x8x32xf32>
    %28 = vector.shape_cast %15 : vector<2x1x1xf32> to vector<2x1xf32>
    %c0_19 = arith.constant 0 : index
    %c0_20 = arith.constant 0 : index
    %29 = vector.load %arg9[%c0_19, %c0_20] : memref<2x32xf32, #tpu.memory_space<vmem>>, vector<2x32xf32>
    %30 = vector.broadcast %28 : vector<2x1xf32> to vector<2x32xf32>
    %31 = arith.mulf %30, %29 : vector<2x32xf32>
    %cst_21 = arith.constant dense<0.000000e+00> : vector<2x32xf32>
    %32 = vector.multi_reduction <add>, %27, %cst_21 [1] : vector<2x8x32xf32> to vector<2x32xf32>
    %33 = arith.addf %31, %32 : vector<2x32xf32>
    %c0_22 = arith.constant 0 : index
    %c0_23 = arith.constant 0 : index
    %34 = vector.load %arg9[%c0_22, %c0_23] : memref<2x32xf32, #tpu.memory_space<vmem>>, vector<2x32xf32>
    tpu.vector_store %arg9[%c0_22, %c0_23], %33 {strides = array<i32>} : memref<2x32xf32, #tpu.memory_space<vmem>>, vector<2x32xf32>,
    %35 = vector.shape_cast %9 : vector<2x8x1xf32> to vector<2x8xf32>
    %36 = arith.index_cast %arg1 : i32 to index
    %c0_24 = arith.constant 0 : index
    %c0_25 = arith.constant 0 : index
    %37 = vector.load %arg6[%36, %c0_24, %c0_25] : memref<1x2x8xf32, #tpu.memory_space<vmem>>, vector<1x2x8xf32>
    %38 = vector.shape_cast %37 : vector<1x2x8xf32> to vector<2x8xf32>
    %39 = vector.shape_cast %35 : vector<2x8xf32> to vector<1x2x8xf32>
    tpu.vector_store %arg6[%36, %c0_24, %c0_25], %39 {strides = array<i32>} : memref<1x2x8xf32, #tpu.memory_space<vmem>>, vector<1x2x8xf32>,
    %c0_i32_26 = arith.constant 0 : i32
    %40 = arith.cmpi eq, %arg1, %c0_i32_26 : i32
    %41 = arith.extui %40 : i1 to i32
    %c0_i32_27 = arith.constant 0 : i32
    %42 = arith.cmpi ne, %41, %c0_i32_27 : i32
    scf.if %42 {
      %c0_28 = arith.constant 0 : index
      %c0_29 = arith.constant 0 : index
      %c0_30 = arith.constant 0 : index
      %43 = vector.load %arg7[%c0_28, %c0_29, %c0_30] : memref<2x1x1xf32, #tpu.memory_space<vmem>>, vector<2x1x1xf32>
      %44 = vector.shape_cast %43 : vector<2x1x1xf32> to vector<2x1xf32>
      %c0_31 = arith.constant 0 : index
      %c0_32 = arith.constant 0 : index
      %c0_33 = arith.constant 0 : index
      %45 = vector.load %arg8[%c0_31, %c0_32, %c0_33] : memref<2x1x1xf32, #tpu.memory_space<vmem>>, vector<2x1x1xf32>
      %46 = vector.shape_cast %45 : vector<2x1x1xf32> to vector<2x1xf32>
      %47 = tpu.reciprocal %46 {approx = true} : vector<2x1xf32> -> vector<2x1xf32>
      %48 = arith.mulf %46, %47 : vector<2x1xf32>
      %cst_34 = arith.constant 2.000000e+00 : f32
      %49 = vector.broadcast %cst_34 : f32 to vector<2x1xf32>
      %50 = arith.subf %49, %48 : vector<2x1xf32>
      %51 = arith.mulf %47, %50 : vector<2x1xf32>
      %c0_35 = arith.constant 0 : index
      %c0_36 = arith.constant 0 : index
      %52 = vector.load %arg9[%c0_35, %c0_36] : memref<2x32xf32, #tpu.memory_space<vmem>>, vector<2x32xf32>
      %53 = vector.broadcast %51 : vector<2x1xf32> to vector<2x32xf32>
      %54 = arith.mulf %52, %53 : vector<2x32xf32>
      %c0_37 = arith.constant 0 : index
      %c0_38 = arith.constant 0 : index
      %55 = vector.load %arg4[%c0_37, %c0_38] : memref<2x32xf32, #tpu.memory_space<vmem>>, vector<2x32xf32>
      tpu.vector_store %arg4[%c0_37, %c0_38], %54 {strides = array<i32>} : memref<2x32xf32, #tpu.memory_space<vmem>>, vector<2x32xf32>,
      %c0_39 = arith.constant 0 : index
      %c0_40 = arith.constant 0 : index
      %c0_41 = arith.constant 0 : index
      %56 = vector.load %arg6[%c0_39, %c0_40, %c0_41] : memref<1x2x8xf32, #tpu.memory_space<vmem>>, vector<1x2x8xf32>
      %57 = vector.shape_cast %56 : vector<1x2x8xf32> to vector<2x8xf32>
      %58 = vector.broadcast %44 : vector<2x1xf32> to vector<2x8xf32>
      %59 = arith.subf %57, %58 : vector<2x8xf32>
      %60 = math.exp %59 : vector<2x8xf32>
      %61 = vector.broadcast %51 : vector<2x1xf32> to vector<2x8xf32>
      %62 = arith.mulf %60, %61 : vector<2x8xf32>
      %c0_42 = arith.constant 0 : index
      %c0_43 = arith.constant 0 : index
      %63 = vector.load %arg5[%c0_42, %c0_43] : memref<2x8xf32, #tpu.memory_space<vmem>>, vector<2x8xf32>
      tpu.vector_store %arg5[%c0_42, %c0_43], %62 {strides = array<i32>} : memref<2x8xf32, #tpu.memory_space<vmem>>, vector<2x8xf32>,
    } else {
    }
    return
  }
  func.func @transform_0(%arg0: i32, %arg1: i32) -> (i32, i32, i32) {
    %c0_i32 = arith.constant 0 : i32
    %c0_i32_0 = arith.constant 0 : i32
    return %arg0, %arg1, %c0_i32 : i32, i32, i32
  }
  func.func @transform_1(%arg0: i32, %arg1: i32) -> (i32, i32) {
    %c0_i32 = arith.constant 0 : i32
    %c0_i32_0 = arith.constant 0 : i32
    return %arg0, %c0_i32 : i32, i32
  }
  func.func @transform_2(%arg0: i32, %arg1: i32) -> (i32, i32) {
    %c0_i32 = arith.constant 0 : i32
    %c0_i32_0 = arith.constant 0 : i32
    return %arg0, %c0_i32 : i32, i32
  }
  func.func @transform_3(%arg0: i32, %arg1: i32) -> (i32, i32) {
    %c0_i32 = arith.constant 0 : i32
    %c0_i32_0 = arith.constant 0 : i32
    return %arg0, %c0_i32 : i32, i32
  }
}

</mosaic_0001>

<llo_original>
// kernel: tpu_custom_call.1
$region0: #{tpu_custom_call.1}
  #allocation0 [shape = 'u32[]', space=smem, size = 0x4, offset = 0x4, fixed_abs, tag = 'smem constant byte address 0x4 - core index']
  #allocation1 [shape = 'u32[144,128]{1,0:T(1,128)}', space=vmem, size = 0x12000, scoped, tag = 'internal scratch']
  #allocation2 [shape = 'f32[1,2,8]{2,1,0:T(2,128)}', space=vmem, size = 0x400, scoped, tag = 'scratch operand']
  #allocation3 [shape = 'f32[2,1,1]{2,1,0:T(1,128)}', space=vmem, size = 0x400, scoped, tag = 'scratch operand']
  #allocation4 [shape = 'f32[2,1,1]{2,1,0:T(1,128)}', space=vmem, size = 0x400, scoped, tag = 'scratch operand']
  #allocation5 [shape = 'f32[2,32]{1,0:T(2,128)}', space=vmem, size = 0x400, scoped, tag = 'scratch operand']
  %s0 = inlined_call_operand.hbm [shape: f32[2,8,32], index: 0, kind: input, shape index: {}]
  %s1 = inlined_call_operand.vmem [shape: f32[2,32], index: 1, kind: input, shape index: {}]
  %s2 = inlined_call_operand.hbm [shape: f32[2,32], index: 2, kind: output, shape index: {0}]
  %s3 = inlined_call_operand.hbm [shape: f32[2,8], index: 3, kind: output, shape index: {1}]
  %4 = xla_tuple %s2, %s3
  %s5 = sld [smem:[#allocation0]]
  $region38: #{tpu_custom_call.1} parent=0
    _
  %s7 = ssub.s32 1, %s5
  %s8 = scalar_select 0, %s7, %s5
  $region1: #{tpu_custom_call.1} parent=0
    #allocation6 [shape = 'u8[8192]{0}', space=vmem, size = 0x2000, scoped, tag = 'input window, operand 0, single buffered']
    #allocation7 [shape = 's32[1]{0}', space=sflag, size = 0x4, scoped, tag = 'scoped memory for tpu_custom_call.1']
    #allocation8 [shape = 's32[1]{0}', space=sflag, size = 0x4, scoped, tag = 'scoped memory for tpu_custom_call.1']
    #allocation9 [shape = 'u8[1024]{0}', space=vmem, size = 0x400, scoped, tag = 'output window, operand 0, single buffered']
    #allocation10 [shape = 'u8[1024]{0}', space=vmem, size = 0x400, scoped, tag = 'output window, operand 1, single buffered']
    #allocation11 [shape = 's32[1]{0}', space=sflag, size = 0x4, scoped, tag = 'scoped memory for tpu_custom_call.1']
    %9 = vsyncpa [#allocation7], 0
    %10 = vsyncpa [#allocation8], 0
    %11 = vsyncpa [#allocation11], 0
    // Predicated region
    $region2: #{tpu_custom_call.1} parent=1 // pred_check
      _
    $region3: #{tpu_custom_call.1} parent=1 // pred_check_branch
      %13 = sbr.rel (0) target = $region5
    $region4: #{tpu_custom_call.1} parent=1 // pred_region
      %s15 = ssub.s32 256, 256
      %16 = vsyncadd [#allocation7], %s15
      %s17 = sshll.u32 [#allocation6], 4
      %s18 = int_to_ptr.vmem [resolvable:$true] %s17
      %23 = dma.hbm_to_vmem [thread:$0]  %s0, 256, %s18, [#allocation7], 128, 128, 8
    $region5: #{tpu_custom_call.1} parent=1 // pred_fallthru
      _
    // Predicated region
    $region6: #{tpu_custom_call.1} parent=1 // pred_check
      _
    $region7: #{tpu_custom_call.1} parent=1 // pred_check_branch
      %25 = sbr.rel (0) target = $region9
    $region8: #{tpu_custom_call.1} parent=1 // pred_region
      _
    $region9: #{tpu_custom_call.1} parent=1 // pred_fallthru
      _
    // Predicated region
    $region10: #{tpu_custom_call.1} parent=1 // pred_check
      _
    $region11: #{tpu_custom_call.1} parent=1 // pred_check_branch
      %27 = sbr.rel (0) target = $region13
    $region12: #{tpu_custom_call.1} parent=1 // pred_region
      %28 = dma.done [#allocation7], 256
    $region13: #{tpu_custom_call.1} parent=1 // pred_fallthru
      _
    %p29 = scmp.eq.s32.totalorder 0, 0
    // Predicated region
    $region14: #{tpu_custom_call.1} parent=1 // pred_check
      %p30 = pneg %p29
    $region15: #{tpu_custom_call.1} parent=1 // pred_check_branch
      %32 = sbr.rel (%p30) target = $region17
    $region16: #{tpu_custom_call.1} parent=1 // pred_region
      %vm33 = vcmask 0
      %34 = vst.msk [vmem:[#allocation3] sm:$0x1] %vm33, -inf
      %35 = vst.msk [vmem:[#allocation3 + $0x1] sm:$0x1] %vm33, -inf
      %36 = vst.msk [vmem:[#allocation4] sm:$0x1] %vm33, 0.0
      %37 = vst.msk [vmem:[#allocation4 + $0x1] sm:$0x1] %vm33, 0.0
      %vm38 = vcmask 254976
      %39 = vst.msk [vmem:[#allocation5] sm:$0x3] %vm38, 0.0
    $region17: #{tpu_custom_call.1} parent=1 // pred_fallthru
      _
    %v40 = vld [vmem:[#allocation6] sm:$0xff]
    %v41 = vld [vmem:[#allocation6 + $0x8] sm:$0xff]
    %v42 = vld [vmem:[%s1] sm:$0x3]
    %v45 = vunpack.c.l.s4 1966171168
    %v46 = vunpack.c.0.s8 %v45
    %v47 = vlaneseq
    %v48 = vshrl.u32 %v47, 7
    %v49 = vsub.s32 %v46, %v48
    %v50 = vrot.slane %v42, %v49
    %v51 = vcombine.high %v50, %v50
    %v53 = vunpack.c.l.s4 1966171168
    %v54 = vunpack.c.0.s8 %v53
    %v55 = vlaneseq
    %v56 = vshrl.u32 %v55, 7
    %v57 = vsub.s32 %v54, %v56
    %v58 = vrot.slane %v50, %v57
    %v60 = vunpack.c.l.s4 1966171168
    %v61 = vunpack.c.0.s8 %v60
    %v62 = vlaneseq
    %v63 = vshrl.u32 %v62, 7
    %v64 = vsub.s32 %v61, %v63
    %v65 = vrot.slane %v51, %v64
    %v66 = vlaneseq
    %v67 = vshrl.u32 %v66, 7
    %v68 = vsub.s32 0, %v67
    %v69 = vrot.slane %v58, %v68
    %v70 = vlaneseq
    %v71 = vshrl.u32 %v70, 7
    %v72 = vsub.s32 0, %v71
    %v73 = vrot.slane %v65, %v72
    %v76 = vmul.f32 %v40, %v69
    %v77 = vmul.f32 %v41, %v73
    %vm78 = vcmask 261120
    %v79 = vsel %vm78, %v76, 0.0
    %80 = vadd.xlane.f32.xlu0 %v79
    %v81 = vpop.xlane.xlu0 %80
    %v82 = vsel %vm78, %v77, 0.0
    %83 = vadd.xlane.f32.xlu0 %v82
    %v84 = vpop.xlane.xlu0 %83
    %v85 = vld [vmem:[#allocation3] sm:$0x1]
    %v86 = vld [vmem:[#allocation3 + $0x1] sm:$0x1]
    %v87 = vrot.slane %v81, 4
    %v88 = vmax.f32 %v81, %v87
    %v89 = vrot.slane %v88, 2
    %v90 = vmax.f32 %v88, %v89
    %v91 = vrot.slane %v90, 1
    %v92 = vmax.f32 %v90, %v91
    %v93 = vrot.slane %v84, 4
    %v94 = vmax.f32 %v84, %v93
    %v95 = vrot.slane %v94, 2
    %v96 = vmax.f32 %v94, %v95
    %v97 = vrot.slane %v96, 1
    %v98 = vmax.f32 %v96, %v97
    %v99 = vmax.f32 %v85, %v92
    %v100 = vmax.f32 %v86, %v98
    %v101 = vsub.f32 %v85, %v99
    %v102 = vsub.f32 %v86, %v100
    %v103 = vmul.f32 %v101, 1.442695
    %v104 = vpow.pop %v103
    %v105 = vmul.f32 %v102, 1.442695
    %v106 = vpow.pop %v105
    %v109 = vlaneseq
    %v110 = vshrl.u32 %v109, 7
    %v111 = vsub.s32 0, %v110
    %v112 = vrot.slane %v99, %v111
    %v113 = vlaneseq
    %v114 = vshrl.u32 %v113, 7
    %v115 = vsub.s32 0, %v114
    %v116 = vrot.slane %v100, %v115
    %v119 = vsub.f32 %v81, %v112
    %v120 = vsub.f32 %v84, %v116
    %v121 = vmul.f32 %v119, 1.442695
    %v122 = vpow.pop %v121
    %v123 = vmul.f32 %v120, 1.442695
    %v124 = vpow.pop %v123
    %v125 = vld [vmem:[#allocation4] sm:$0x1]
    %v126 = vld [vmem:[#allocation4 + $0x1] sm:$0x1]
    %v127 = vmul.f32 %v104, %v125
    %v128 = vmul.f32 %v106, %v126
    %vm129 = vcmask 7168
    %v130 = vsel %vm129, %v122, 0.0
    %v131 = vrot.slane %v130, 4
    %v132 = vadd.f32 %v130, %v131
    %v133 = vrot.slane %v132, 2
    %v134 = vadd.f32 %v132, %v133
    %v135 = vrot.slane %v134, 1
    %v136 = vadd.f32 %v134, %v135
    %v137 = vsel %vm129, %v124, 0.0
    %v138 = vrot.slane %v137, 4
    %v139 = vadd.f32 %v137, %v138
    %v140 = vrot.slane %v139, 2
    %v141 = vadd.f32 %v139, %v140
    %v142 = vrot.slane %v141, 1
    %v143 = vadd.f32 %v141, %v142
    %v144 = vadd.f32 %v127, %v136
    %v145 = vadd.f32 %v128, %v143
    %vm146 = vcmask 0
    %147 = vst.msk [vmem:[#allocation4] sm:$0x1] %vm146, %v144
    %148 = vst.msk [vmem:[#allocation4 + $0x1] sm:$0x1] %vm146, %v145
    %149 = vst.msk [vmem:[#allocation3] sm:$0x1] %vm146, %v99
    %150 = vst.msk [vmem:[#allocation3 + $0x1] sm:$0x1] %vm146, %v100
    %152 = vset.pattern.permute.xlu0 0
    %153 = vperm.xlu0 %152, %v122
    %v154 = vpop.permute.xlu0 %153
    %157 = vset.pattern.permute.xlu0 0
    %158 = vperm.xlu0 %157, %v124
    %v159 = vpop.permute.xlu0 %158
    %v161 = vmul.f32 %v154, %v40
    %v162 = vmul.f32 %v159, %v41
    %v163 = vld [vmem:[#allocation5] sm:$0x3]
    %165 = vset.pattern.permute.xlu0 0
    %166 = vperm.xlu0 %165, %v104
    %v167 = vpop.permute.xlu0 %166
    %v169 = vlaneseq
    %v170 = vshrl.u32 %v169, 7
    %v171 = vsub.s32 0, %v170
    %v172 = vrot.slane %v167, %v171
    %174 = vset.pattern.permute.xlu0 0
    %175 = vperm.xlu0 %174, %v106
    %v176 = vpop.permute.xlu0 %175
    %v178 = vlaneseq
    %v179 = vshrl.u32 %v178, 7
    %v180 = vsub.s32 0, %v179
    %v181 = vrot.slane %v176, %v180
    %v184 = vunpack.c.l.s4 1966171168
    %v185 = vunpack.c.0.s8 %v184
    %v186 = vlaneseq
    %v187 = vshrl.u32 %v186, 7
    %v188 = vsub.s32 %v185, %v187
    %v189 = vrot.slane %v163, %v188
    %v190 = vcombine.high %v189, %v189
    %v192 = vunpack.c.l.s4 1966171168
    %v193 = vunpack.c.0.s8 %v192
    %v194 = vlaneseq
    %v195 = vshrl.u32 %v194, 7
    %v196 = vsub.s32 %v193, %v195
    %v197 = vrot.slane %v189, %v196
    %v199 = vunpack.c.l.s4 1966171168
    %v200 = vunpack.c.0.s8 %v199
    %v201 = vlaneseq
    %v202 = vshrl.u32 %v201, 7
    %v203 = vsub.s32 %v200, %v202
    %v204 = vrot.slane %v190, %v203
    %v207 = vmul.f32 %v172, %v197
    %v208 = vmul.f32 %v181, %v204
    %v209 = vsel %vm78, %v161, 0.0
    %v210 = vrot.slane %v209, 4
    %v211 = vadd.f32 %v209, %v210
    %v212 = vrot.slane %v211, 2
    %v213 = vadd.f32 %v211, %v212
    %v214 = vrot.slane %v213, 1
    %v215 = vadd.f32 %v213, %v214
    %v216 = vsel %vm78, %v162, 0.0
    %v217 = vrot.slane %v216, 4
    %v218 = vadd.f32 %v216, %v217
    %v219 = vrot.slane %v218, 2
    %v220 = vadd.f32 %v218, %v219
    %v221 = vrot.slane %v220, 1
    %v222 = vadd.f32 %v220, %v221
    %v226 = vunpack.c.l.s4 1966171168
    %v227 = vunpack.c.0.s8 %v226
    %v228 = vlaneseq
    %v229 = vshrl.u32 %v228, 7
    %v230 = vsub.s32 %v227, %v229
    %v231 = vrot.slane %v215, %v230
    %v233 = vunpack.c.l.s4 1966171168
    %v234 = vunpack.c.0.s8 %v233
    %v235 = vlaneseq
    %v236 = vshrl.u32 %v235, 7
    %v237 = vsub.s32 %v234, %v236
    %v238 = vrot.slane %v231, %v237
    %v240 = vunpack.c.l.s4 1966171168
    %v241 = vunpack.c.0.s8 %v240
    %v242 = vlaneseq
    %v243 = vshrl.u32 %v242, 7
    %v244 = vsub.s32 %v241, %v243
    %v245 = vrot.slane %v222, %v244
    %v247 = vunpack.c.l.s4 1966171168
    %v248 = vunpack.c.0.s8 %v247
    %v249 = vlaneseq
    %v250 = vshrl.u32 %v249, 7
    %v251 = vsub.s32 %v248, %v250
    %v252 = vrot.slane %v245, %v251
    %v255 = vadd.f32 %v207, %v238
    %v256 = vadd.f32 %v208, %v252
    %v259 = vcombine.low %v255, %v256
    %v261 = vunpack.c.l.s4 1966171168
    %v262 = vunpack.c.0.s8 %v261
    %v263 = vlaneseq
    %v264 = vshrl.u32 %v263, 7
    %v265 = vsub.s32 %v262, %v264
    %v266 = vrot.slane %v259, %v265
    %v268 = vunpack.c.l.s4 1966171168
    %v269 = vunpack.c.0.s8 %v268
    %v270 = vlaneseq
    %v271 = vshrl.u32 %v270, 7
    %v272 = vsub.s32 %v269, %v271
    %v273 = vrot.slane %v266, %v272
    %vm275 = vcmask 254976
    %276 = vst.msk [vmem:[#allocation5] sm:$0x3] %vm275, %v273
    %v279 = vlaneseq
    %v280 = vand.u32 %v279, 127
    %v281 = vlaneseq
    %v282 = vshrl.u32 %v281, 7
    %v283 = vsub.s32 %v280, %v282
    %v284 = vrot.slane %v81, %v283
    %v285 = vlaneseq
    %v286 = vshrl.u32 %v285, 7
    %v287 = vsub.s32 %v280, %v286
    %v288 = vrot.slane %v84, %v287
    %vm289 = vcmask 1041409
    %v290 = vsel %vm289, %v288, %v284
    %s292 = smul.u32 0, 2
    %s293 = scalar_lea.vmem [#allocation2], %s292
    %vm294 = vcmask 58368
    %295 = vst.msk [vmem:[%s293] sm:$0x3] %vm294, %v290
    // Predicated region
    $region18: #{tpu_custom_call.1} parent=1 // pred_check
      %p296 = pneg %p29
    $region19: #{tpu_custom_call.1} parent=1 // pred_check_branch
      %298 = sbr.rel (%p296) target = $region21
    $region20: #{tpu_custom_call.1} parent=1 // pred_region
      %v299 = vld [vmem:[#allocation3] sm:$0x1]
      %v300 = vld [vmem:[#allocation3 + $0x1] sm:$0x1]
      %v301 = vld [vmem:[#allocation4] sm:$0x1]
      %v302 = vld [vmem:[#allocation4 + $0x1] sm:$0x1]
      %v303 = vrcp.pop %v301
      %v304 = vrcp.pop %v302
      %v305 = vmul.f32 %v301, %v303
      %v306 = vmul.f32 %v302, %v304
      %v307 = vsub.f32 2.0, %v305
      %v308 = vsub.f32 2.0, %v306
      %v309 = vmul.f32 %v303, %v307
      %v310 = vmul.f32 %v304, %v308
      %v311 = vld [vmem:[#allocation5] sm:$0x3]
      %313 = vset.pattern.permute.xlu0 0
      %314 = vperm.xlu0 %313, %v309
      %v315 = vpop.permute.xlu0 %314
      %v317 = vlaneseq
      %v318 = vshrl.u32 %v317, 7
      %v319 = vsub.s32 0, %v318
      %v320 = vrot.slane %v315, %v319
      %322 = vset.pattern.permute.xlu0 0
      %323 = vperm.xlu0 %322, %v310
      %v324 = vpop.permute.xlu0 %323
      %v326 = vlaneseq
      %v327 = vshrl.u32 %v326, 7
      %v328 = vsub.s32 0, %v327
      %v329 = vrot.slane %v324, %v328
      %v332 = vcombine.low %v320, %v329
      %v334 = vunpack.c.l.s4 1966171168
      %v335 = vunpack.c.0.s8 %v334
      %v336 = vlaneseq
      %v337 = vshrl.u32 %v336, 7
      %v338 = vsub.s32 %v335, %v337
      %v339 = vrot.slane %v332, %v338
      %v341 = vunpack.c.l.s4 1966171168
      %v342 = vunpack.c.0.s8 %v341
      %v343 = vlaneseq
      %v344 = vshrl.u32 %v343, 7
      %v345 = vsub.s32 %v342, %v344
      %v346 = vrot.slane %v339, %v345
      %v348 = vmul.f32 %v311, %v346
      %349 = vst.msk [vmem:[#allocation9] sm:$0x3] %vm275, %v348
      %v350 = vld [vmem:[#allocation2] sm:$0x3]
      %352 = vset.pattern.permute.xlu0 0
      %353 = vperm.xlu0 %352, %v299
      %v354 = vpop.permute.xlu0 %353
      %v356 = vlaneseq
      %v357 = vshrl.u32 %v356, 7
      %v358 = vsub.s32 0, %v357
      %v359 = vrot.slane %v354, %v358
      %361 = vset.pattern.permute.xlu0 0
      %362 = vperm.xlu0 %361, %v300
      %v363 = vpop.permute.xlu0 %362
      %v365 = vlaneseq
      %v366 = vshrl.u32 %v365, 7
      %v367 = vsub.s32 0, %v366
      %v368 = vrot.slane %v363, %v367
      %v371 = vcombine.low %v359, %v368
      %v373 = vunpack.c.l.s4 1966171168
      %v374 = vunpack.c.0.s8 %v373
      %v375 = vlaneseq
      %v376 = vshrl.u32 %v375, 7
      %v377 = vsub.s32 %v374, %v376
      %v378 = vrot.slane %v371, %v377
      %v380 = vunpack.c.l.s4 1966171168
      %v381 = vunpack.c.0.s8 %v380
      %v382 = vlaneseq
      %v383 = vshrl.u32 %v382, 7
      %v384 = vsub.s32 %v381, %v383
      %v385 = vrot.slane %v378, %v384
      %v387 = vsub.f32 %v350, %v385
      %v388 = vmul.f32 %v387, 1.442695
      %v389 = vpow.pop %v388
      %v390 = vmul.f32 %v389, %v346
      %391 = vst.msk [vmem:[#allocation10] sm:$0x3] %vm294, %v390
    $region21: #{tpu_custom_call.1} parent=1 // pred_fallthru
      _
    // Predicated region
    $region22: #{tpu_custom_call.1} parent=1 // pred_check
      _
    $region23: #{tpu_custom_call.1} parent=1 // pred_check_branch
      %393 = sbr.rel (0) target = $region25
    $region24: #{tpu_custom_call.1} parent=1 // pred_region
      %s395 = ssub.s32 32, 32
      %396 = vsyncadd [#allocation8], %s395
      %s398 = sshll.u32 [#allocation9], 4
      %s399 = int_to_ptr.vmem [resolvable:$true] %s398
      %401 = dma.vmem_to_hbm [thread:$0]  %s399, 32, %s2, [#allocation8]
    $region25: #{tpu_custom_call.1} parent=1 // pred_fallthru
      _
    // Predicated region
    $region26: #{tpu_custom_call.1} parent=1 // pred_check
      _
    $region27: #{tpu_custom_call.1} parent=1 // pred_check_branch
      %403 = sbr.rel (0) target = $region29
    $region28: #{tpu_custom_call.1} parent=1 // pred_region
      %s405 = ssub.s32 32, 32
      %406 = vsyncadd [#allocation11], %s405
      %s408 = sshll.u32 [#allocation10], 4
      %s409 = int_to_ptr.vmem [resolvable:$true] %s408
      %411 = dma.vmem_to_hbm [thread:$0]  %s409, 32, %s3, [#allocation11]
    $region29: #{tpu_custom_call.1} parent=1 // pred_fallthru
      _
    // Predicated region
    $region30: #{tpu_custom_call.1} parent=1 // pred_check
      _
    $region31: #{tpu_custom_call.1} parent=1 // pred_check_branch
      %413 = sbr.rel (0) target = $region33
    $region32: #{tpu_custom_call.1} parent=1 // pred_region
      %414 = dma.done [#allocation8], 32
    $region33: #{tpu_custom_call.1} parent=1 // pred_fallthru
      _
    // Predicated region
    $region34: #{tpu_custom_call.1} parent=1 // pred_check
      _
    $region35: #{tpu_custom_call.1} parent=1 // pred_check_branch
      %416 = sbr.rel (0) target = $region37
    $region36: #{tpu_custom_call.1} parent=1 // pred_region
      %417 = dma.done [#allocation11], 32
    $region37: #{tpu_custom_call.1} parent=1 // pred_fallthru
      _
    %418 = vsyncpa [#allocation7], 1
    %419 = vsyncpa [#allocation8], 1
    %420 = vsyncpa [#allocation11], 1

</llo_original>
